<compile_context>
chip_gen: v7x
topology: tpu7x:2x2x1
jax: 0.10.0
libtpu: 0.0.40
codegen_flags: <defaults>
</compile_context>

<pallas_src>
import jax
import jax.numpy as jnp
from jax.experimental import pallas as pl
from jax.experimental.pallas import tpu as pltpu


# ----------------------------------------------------------------------------
# Kernel: fused twin-Q forward for one batch tile.
#   slab_in : (S + A + 1, 2*H0)   rows [0:S]=W1s|W4s, [S:S+A]=W1a|W4a, last=b1|b4
#   slab_mid: (2*H0 + 1, 2*H1)    rows [0:2H0]=blockdiag(W2,W5), last=b2|b5
#   slab_out: (2*H1 + 1, 128)     rows [0:2H1]=blockdiag(W3,W6) zero-padded to
#                                 128 lanes, last row = [b3, b6, 0, ...]
# ----------------------------------------------------------------------------
def critic_kernel(state_ref, action_ref, wi_ref, wm_ref, wo_ref, out_ref):
    S = state_ref.shape[1]
    A = action_ref.shape[1]
    H2 = wm_ref.shape[0] - 1   # 2 * hidden[0]
    K2 = wo_ref.shape[0] - 1   # 2 * hidden[1]

    # Layer 1 (both heads): relu(state @ Ws + action @ Wa + b)
    h = (jnp.dot(state_ref[...], wi_ref[0:S, :],
                 preferred_element_type=jnp.float32)
         + jnp.dot(action_ref[...], wi_ref[S:S + A, :],
                   preferred_element_type=jnp.float32)
         + wi_ref[S + A:S + A + 1, :])
    h = jnp.maximum(h, 0.0)

    # Layer 2 (both heads, block-diagonal): relu(h @ W + b)
    h = jnp.maximum(
        jnp.dot(h, wm_ref[0:H2, :], preferred_element_type=jnp.float32)
        + wm_ref[H2:H2 + 1, :],
        0.0)

    # Layer 3 (both heads, block-diagonal, lane-padded to 128): h @ W + b
    q = (jnp.dot(h, wo_ref[0:K2, :], preferred_element_type=jnp.float32)
         + wo_ref[K2:K2 + 1, :])
    out_ref[...] = q.astype(out_ref.dtype)


# ----------------------------------------------------------------------------
# Wrapper
# ----------------------------------------------------------------------------
OUT_W = 128  # lane-dense output slab width


def critic_forward(state, action, slabs, *, block_b=512):
    """Equivalent of Critic.forward(state, action) -> (q1, q2)."""
    state = state.astype(jnp.float32)
    action = action.astype(jnp.float32)
    slab_in, slab_mid, slab_out = slabs
    B, S = state.shape
    A = action.shape[1]

    tb = B if B <= block_b else block_b
    grid = (pl.cdiv(B, tb),)

    out = pl.pallas_call(
        critic_kernel,
        out_shape=jax.ShapeDtypeStruct((B, OUT_W), jnp.float32),
        grid_spec=pltpu.PrefetchScalarGridSpec(
            num_scalar_prefetch=0,
            grid=grid,
            in_specs=[
                pl.BlockSpec((tb, S), lambda i: (i, 0)),
                pl.BlockSpec((tb, A), lambda i: (i, 0)),
                # Weights: constant index_map -> stay VMEM-resident across
                # batch tiles.
                pl.BlockSpec(slab_in.shape, lambda i: (0, 0)),
                pl.BlockSpec(slab_mid.shape, lambda i: (0, 0)),
                pl.BlockSpec(slab_out.shape, lambda i: (0, 0)),
            ],
            out_specs=pl.BlockSpec((tb, OUT_W), lambda i: (i, 0)),
        ),
        compiler_params=pltpu.CompilerParams(
            dimension_semantics=("parallel",)),
    )(state, action, slab_in, slab_mid, slab_out)

    q1 = out[:, 0:1]
    q2 = out[:, 1:2]
    return q1, q2


# ----------------------------------------------------------------------------
# Parameter init (matches nn.Linear default U(-1/sqrt(fan_in), +)) + packing
# ----------------------------------------------------------------------------
def init_linear(key, fan_in, fan_out):
    kw, kb = jax.random.split(key)
    bound = 1.0 / float(jnp.sqrt(jnp.float32(fan_in)))
    w = jax.random.uniform(kw, (fan_in, fan_out), jnp.float32, -bound, bound)
    b = jax.random.uniform(kb, (1, fan_out), jnp.float32, -bound, bound)
    return w, b


def init_critic_params(key, state_dim, action_dim, hidden=(256, 256)):
    in_dim = state_dim + action_dim
    keys = jax.random.split(key, 6)
    w1, b1 = init_linear(keys[0], in_dim, hidden[0])
    w2, b2 = init_linear(keys[1], hidden[0], hidden[1])
    w3, b3 = init_linear(keys[2], hidden[1], 1)
    w4, b4 = init_linear(keys[3], in_dim, hidden[0])
    w5, b5 = init_linear(keys[4], hidden[0], hidden[1])
    w6, b6 = init_linear(keys[5], hidden[1], 1)
    return [w1, b1, w2, b2, w3, b3, w4, b4, w5, b5, w6, b6]


def pack_critic_params(params):
    """Pack the 12 Linear params into 3 fused slabs (done once, offline)."""
    (w1, b1, w2, b2, w3, b3, w4, b4, w5, b5, w6, b6) = params
    H0 = w1.shape[1]
    H1 = w2.shape[1]

    # Layer-1 slab: [W1 | W4] with bias row appended.
    w_in = jnp.concatenate([w1, w4], axis=1)                 # (S+A, 2H0)
    b_in = jnp.concatenate([b1, b4], axis=1)                 # (1,   2H0)
    slab_in = jnp.concatenate([w_in, b_in], axis=0)          # (S+A+1, 2H0)

    # Layer-2 slab: block-diag(W2, W5) with bias row appended.
    z = jnp.zeros((H0, H1), jnp.float32)
    w_mid = jnp.concatenate(
        [jnp.concatenate([w2, z], axis=1),
         jnp.concatenate([z, w5], axis=1)], axis=0)          # (2H0, 2H1)
    b_mid = jnp.concatenate([b2, b5], axis=1)                # (1,   2H1)
    slab_mid = jnp.concatenate([w_mid, b_mid], axis=0)       # (2H0+1, 2H1)

    # Layer-3 slab: block-diag(W3, W6) zero-padded to 128 lanes (+ bias row).
    w_out = jnp.zeros((2 * H1, OUT_W), jnp.float32)
    w_out = w_out.at[0:H1, 0:1].set(w3).at[H1:2 * H1, 1:2].set(w6)
    b_out = jnp.zeros((1, OUT_W), jnp.float32)
    b_out = b_out.at[:, 0:1].set(b3).at[:, 1:2].set(b6)
    slab_out = jnp.concatenate([w_out, b_out], axis=0)       # (2H1+1, 128)

    return slab_in, slab_mid, slab_out


def critic_reference(state, action, params):
    """Pure-JAX reference of the PyTorch forward (unfused)."""
    (w1, b1, w2, b2, w3, b3, w4, b4, w5, b5, w6, b6) = params
    sa = jnp.concatenate([state, action], axis=1).astype(jnp.float32)
    q1 = jnp.maximum(sa @ w1 + b1, 0.0)
    q1 = jnp.maximum(q1 @ w2 + b2, 0.0)
    q1 = q1 @ w3 + b3
    q2 = jnp.maximum(sa @ w4 + b4, 0.0)
    q2 = jnp.maximum(q2 @ w5 + b5, 0.0)
    q2 = q2 @ w6 + b6
    return q1, q2


if __name__ == "__main__":
    # Small shapes: batch=8, state_dim=16, action_dim=8, hidden=(32, 32)
    B, state_dim, action_dim = 8, 16, 8
    hidden = (32, 32)

    key = jax.random.PRNGKey(0)
    k_s, k_a, k_p = jax.random.split(key, 3)
    state = jax.random.normal(k_s, (B, state_dim), jnp.float32)
    action = jax.random.normal(k_a, (B, action_dim), jnp.float32)
    params = init_critic_params(k_p, state_dim, action_dim, hidden)
    slabs = pack_critic_params(params)

    q1, q2 = critic_forward(state, action, slabs)
    jax.block_until_ready((q1, q2))

    q1_ref, q2_ref = critic_reference(state, action, params)
    assert q1.shape == (B, 1) and q2.shape == (B, 1)
    assert jnp.allclose(q1, q1_ref, atol=1e-5, rtol=1e-5)
    assert jnp.allclose(q2, q2_ref, atol=1e-5, rtol=1e-5)

    print("KERNEL_OK")
</pallas_src>

<mosaic_0001>
module attributes {stable_mosaic.version = 11 : i64} {
  func.func @critic_kernel(%arg0: i32, %arg1: memref<8x16xf32, #tpu.memory_space<vmem>>, %arg2: memref<8x8xf32, #tpu.memory_space<vmem>>, %arg3: memref<25x64xf32, #tpu.memory_space<vmem>>, %arg4: memref<65x64xf32, #tpu.memory_space<vmem>>, %arg5: memref<65x128xf32, #tpu.memory_space<vmem>>, %arg6: memref<8x128xf32, #tpu.memory_space<vmem>>) attributes {dimension_semantics = [#tpu.dimension_semantics<parallel>], iteration_bounds = array<i64: 1>, scalar_prefetch = 0 : i64, scratch_operands = 0 : i64, tpu.core_type = #tpu.core_type<tc>, window_params = [{transform_indices = @transform_0, window_bounds = array<i64: 8, 16>}, {transform_indices = @transform_1, window_bounds = array<i64: 8, 8>}, {pipeline_mode = #tpu.pipeline_mode<synchronous>, transform_indices = @transform_2, window_bounds = array<i64: 25, 64>}, {pipeline_mode = #tpu.pipeline_mode<synchronous>, transform_indices = @transform_3, window_bounds = array<i64: 65, 64>}, {pipeline_mode = #tpu.pipeline_mode<synchronous>, transform_indices = @transform_4, window_bounds = array<i64: 65, 128>}, {transform_indices = @transform_5, window_bounds = array<i64: 8, 128>}]} {
    %c0 = arith.constant 0 : index
    %c0_0 = arith.constant 0 : index
    %0 = vector.load %arg1[%c0, %c0_0] : memref<8x16xf32, #tpu.memory_space<vmem>>, vector<8x16xf32>
    %c0_1 = arith.constant 0 : index
    %c0_2 = arith.constant 0 : index
    %1 = vector.load %arg3[%c0_1, %c0_2] : memref<25x64xf32, #tpu.memory_space<vmem>>, vector<16x64xf32>
    %cst = arith.constant dense<0.000000e+00> : vector<8x64xf32>
    %2 = tpu.matmul %0, %1, %cst {dimension_numbers = #tpu.dot_dimension_numbers<[1], [0], [0], [1], [0, 0, 1, 1], [], []>} : vector<8x16xf32>, vector<16x64xf32>, vector<8x64xf32> -> vector<8x64xf32>
    %c0_3 = arith.constant 0 : index
    %c0_4 = arith.constant 0 : index
    %3 = vector.load %arg2[%c0_3, %c0_4] : memref<8x8xf32, #tpu.memory_space<vmem>>, vector<8x8xf32>
    %c16 = arith.constant 16 : index
    %c0_5 = arith.constant 0 : index
    %4 = vector.load %arg3[%c16, %c0_5] : memref<25x64xf32, #tpu.memory_space<vmem>>, vector<8x64xf32>
    %cst_6 = arith.constant dense<0.000000e+00> : vector<8x64xf32>
    %5 = tpu.matmul %3, %4, %cst_6 {dimension_numbers = #tpu.dot_dimension_numbers<[1], [0], [0], [1], [0, 0, 1, 1], [], []>} : vector<8x8xf32>, vector<8x64xf32>, vector<8x64xf32> -> vector<8x64xf32>
    %6 = arith.addf %2, %5 : vector<8x64xf32>
    %c24 = arith.constant 24 : index
    %c0_7 = arith.constant 0 : index
    %7 = vector.load %arg3[%c24, %c0_7] : memref<25x64xf32, #tpu.memory_space<vmem>>, vector<1x64xf32>
    %8 = vector.broadcast %7 : vector<1x64xf32> to vector<8x64xf32>
    %9 = arith.addf %6, %8 : vector<8x64xf32>
    %cst_8 = arith.constant 0.000000e+00 : f32
    %10 = vector.broadcast %cst_8 : f32 to vector<8x64xf32>
    %11 = arith.maximumf %9, %10 : vector<8x64xf32>
    %c0_9 = arith.constant 0 : index
    %c0_10 = arith.constant 0 : index
    %12 = vector.load %arg4[%c0_9, %c0_10] : memref<65x64xf32, #tpu.memory_space<vmem>>, vector<64x64xf32>
    %cst_11 = arith.constant dense<0.000000e+00> : vector<8x64xf32>
    %13 = tpu.matmul %11, %12, %cst_11 {dimension_numbers = #tpu.dot_dimension_numbers<[1], [0], [0], [1], [0, 0, 1, 1], [], []>} : vector<8x64xf32>, vector<64x64xf32>, vector<8x64xf32> -> vector<8x64xf32>
    %c64 = arith.constant 64 : index
    %c0_12 = arith.constant 0 : index
    %14 = vector.load %arg4[%c64, %c0_12] : memref<65x64xf32, #tpu.memory_space<vmem>>, vector<1x64xf32>
    %15 = vector.broadcast %14 : vector<1x64xf32> to vector<8x64xf32>
    %16 = arith.addf %13, %15 : vector<8x64xf32>
    %cst_13 = arith.constant 0.000000e+00 : f32
    %17 = vector.broadcast %cst_13 : f32 to vector<8x64xf32>
    %18 = arith.maximumf %16, %17 : vector<8x64xf32>
    %c0_14 = arith.constant 0 : index
    %c0_15 = arith.constant 0 : index
    %19 = vector.load %arg5[%c0_14, %c0_15] : memref<65x128xf32, #tpu.memory_space<vmem>>, vector<64x128xf32>
    %cst_16 = arith.constant dense<0.000000e+00> : vector<8x128xf32>
    %20 = tpu.matmul %18, %19, %cst_16 {dimension_numbers = #tpu.dot_dimension_numbers<[1], [0], [0], [1], [0, 0, 1, 1], [], []>} : vector<8x64xf32>, vector<64x128xf32>, vector<8x128xf32> -> vector<8x128xf32>
    %c64_17 = arith.constant 64 : index
    %c0_18 = arith.constant 0 : index
    %21 = vector.load %arg5[%c64_17, %c0_18] : memref<65x128xf32, #tpu.memory_space<vmem>>, vector<1x128xf32>
    %22 = vector.broadcast %21 : vector<1x128xf32> to vector<8x128xf32>
    %23 = arith.addf %20, %22 : vector<8x128xf32>
    %c0_19 = arith.constant 0 : index
    %c0_20 = arith.constant 0 : index
    %24 = vector.load %arg6[%c0_19, %c0_20] : memref<8x128xf32, #tpu.memory_space<vmem>>, vector<8x128xf32>
    tpu.vector_store %arg6[%c0_19, %c0_20], %23 {strides = array<i32>} : memref<8x128xf32, #tpu.memory_space<vmem>>, vector<8x128xf32>,
    return
  }
  func.func @transform_0(%arg0: i32) -> (i32, i32) {
    %c0_i32 = arith.constant 0 : i32
    %c0_i32_0 = arith.constant 0 : i32
    return %arg0, %c0_i32 : i32, i32
  }
  func.func @transform_1(%arg0: i32) -> (i32, i32) {
    %c0_i32 = arith.constant 0 : i32
    %c0_i32_0 = arith.constant 0 : i32
    return %arg0, %c0_i32 : i32, i32
  }
  func.func @transform_2(%arg0: i32) -> (i32, i32) {
    %c0_i32 = arith.constant 0 : i32
    %c0_i32_0 = arith.constant 0 : i32
    %c0_i32_1 = arith.constant 0 : i32
    return %c0_i32, %c0_i32_0 : i32, i32
  }
  func.func @transform_3(%arg0: i32) -> (i32, i32) {
    %c0_i32 = arith.constant 0 : i32
    %c0_i32_0 = arith.constant 0 : i32
    %c0_i32_1 = arith.constant 0 : i32
    return %c0_i32, %c0_i32_0 : i32, i32
  }
  func.func @transform_4(%arg0: i32) -> (i32, i32) {
    %c0_i32 = arith.constant 0 : i32
    %c0_i32_0 = arith.constant 0 : i32
    %c0_i32_1 = arith.constant 0 : i32
    return %c0_i32, %c0_i32_0 : i32, i32
  }
  func.func @transform_5(%arg0: i32) -> (i32, i32) {
    %c0_i32 = arith.constant 0 : i32
    %c0_i32_0 = arith.constant 0 : i32
    return %arg0, %c0_i32 : i32, i32
  }
}

</mosaic_0001>

<llo_original>
// kernel: tpu_custom_call.1
$region0: #{tpu_custom_call.1}
  #allocation0 [shape = 'u32[]', space=smem, size = 0x4, offset = 0x4, fixed_abs, tag = 'smem constant byte address 0x4 - core index']
  #allocation1 [shape = 'u32[144,128]{1,0:T(1,128)}', space=vmem, size = 0x12000, scoped, tag = 'internal scratch']
  %s0 = inlined_call_operand.vmem [shape: f32[8,16], index: 0, kind: input, shape index: {}]
  %s1 = inlined_call_operand.vmem [shape: f32[8,8], index: 1, kind: input, shape index: {}]
  %s2 = inlined_call_operand.vmem [shape: f32[25,64], index: 2, kind: input, shape index: {}]
  %s3 = inlined_call_operand.vmem [shape: f32[65,64], index: 3, kind: input, shape index: {}]
  %s4 = inlined_call_operand.vmem [shape: f32[65,128], index: 4, kind: input, shape index: {}]
  %s5 = inlined_call_operand.hbm [shape: f32[8,128], index: 5, kind: output, shape index: {}]
  %s6 = sld [smem:[#allocation0]]
  $region30: #{tpu_custom_call.1} parent=0
    _
  %s8 = ssub.s32 1, %s6
  %s9 = scalar_select 0, %s8, %s6
  $region1: #{tpu_custom_call.1} parent=0
    #allocation2 [shape = 'u8[4096]{0}', space=vmem, size = 0x1000, scoped, tag = 'output window, operand 0, single buffered']
    #allocation3 [shape = 's32[1]{0}', space=sflag, size = 0x4, scoped, tag = 'scoped memory for tpu_custom_call.1']
    %10 = vsyncpa [#allocation3], 0
    // Predicated region
    $region2: #{tpu_custom_call.1} parent=1 // pred_check
      _
    $region3: #{tpu_custom_call.1} parent=1 // pred_check_branch
      %12 = sbr.rel (0) target = $region5
    $region4: #{tpu_custom_call.1} parent=1 // pred_region
      _
    $region5: #{tpu_custom_call.1} parent=1 // pred_fallthru
      _
    // Predicated region
    $region6: #{tpu_custom_call.1} parent=1 // pred_check
      _
    $region7: #{tpu_custom_call.1} parent=1 // pred_check_branch
      %14 = sbr.rel (0) target = $region9
    $region8: #{tpu_custom_call.1} parent=1 // pred_region
      _
    $region9: #{tpu_custom_call.1} parent=1 // pred_fallthru
      _
    // Predicated region
    $region10: #{tpu_custom_call.1} parent=1 // pred_check
      _
    $region11: #{tpu_custom_call.1} parent=1 // pred_check_branch
      %16 = sbr.rel (0) target = $region13
    $region12: #{tpu_custom_call.1} parent=1 // pred_region
      _
    $region13: #{tpu_custom_call.1} parent=1 // pred_fallthru
      _
    // Predicated region
    $region14: #{tpu_custom_call.1} parent=1 // pred_check
      _
    $region15: #{tpu_custom_call.1} parent=1 // pred_check_branch
      %18 = sbr.rel (0) target = $region17
    $region16: #{tpu_custom_call.1} parent=1 // pred_region
      _
    $region17: #{tpu_custom_call.1} parent=1 // pred_fallthru
      _
    // Predicated region
    $region18: #{tpu_custom_call.1} parent=1 // pred_check
      _
    $region19: #{tpu_custom_call.1} parent=1 // pred_check_branch
      %20 = sbr.rel (0) target = $region21
    $region20: #{tpu_custom_call.1} parent=1 // pred_region
      _
    $region21: #{tpu_custom_call.1} parent=1 // pred_fallthru
      _
    %v21 = vld [vmem:[%s0] sm:$0xff]
    %v22 = vld [vmem:[%s2] sm:$0xff]
    %v23 = vld [vmem:[%s2 + $0x8] sm:$0xff]
    %v24 = vld [vmem:[%s1] sm:$0xff]
    %v25 = vld [vmem:[%s2 + $0x10] sm:$0xff]
    %vm26 = vcmask 64512
    %v28 = vsel %vm26, %v24, 0
    %30 = vmatprep.subr.mxu0 0.0
    %31 = vmatpush1.msra.mxu0 %v25
    %32 = vmatprep.subr.mxu0 0.0
    %33 = vmatpush1.msra.mxu0 0.0
    %34 = vmatprep.subr.mxu0 0.0
    %35 = vmatpush1.msra.mxu0 0.0
    %36 = vmatprep.subr.mxu0 0.0
    %37 = vmatpush1.msra.mxu0 0.0
    %38 = vmatprep.subr.mxu0 0.0
    %39 = vmatpush1.msra.mxu0 0.0
    %40 = vmatprep.subr.mxu0 0.0
    %41 = vmatpush1.msra.mxu0 0.0
    %42 = vmatprep.subr.mxu0 0.0
    %43 = vmatpush1.msra.mxu0 0.0
    %44 = vmatprep.subr.mxu0 0.0
    %45 = vmatpush1.msra.mxu0 0.0
    %46 = vmatprep.subr.mxu0 0.0
    %47 = vmatpush1.msra.mxu0 0.0
    %48 = vmatprep.subr.mxu0 0.0
    %49 = vmatpush1.msra.mxu0 0.0
    %50 = vmatprep.subr.mxu0 0.0
    %51 = vmatpush1.msra.mxu0 0.0
    %52 = vmatprep.subr.mxu0 0.0
    %53 = vmatpush1.msra.mxu0 0.0
    %54 = vmatprep.subr.mxu0 0.0
    %55 = vmatpush1.msra.mxu0 0.0
    %56 = vmatprep.subr.mxu0 0.0
    %57 = vmatpush1.msra.mxu0 0.0
    %58 = vmatprep.subr.mxu0 0.0
    %59 = vmatpush1.msra.mxu0 0.0
    %60 = vmatprep.subr.mxu0 0.0
    %61 = vmatpush1.msra.mxu0 0.0
    %62 = vmatprep.subr.mxu0 0.0
    %63 = vmatpush1.msra.mxu0 0.0
    %64 = vmatprep.subr.mxu0 0.0
    %65 = vmatpush1.msra.mxu0 0.0
    %66 = vmatprep.subr.mxu0 0.0
    %67 = vmatpush1.msra.mxu0 0.0
    %68 = vmatprep.subr.mxu0 0.0
    %69 = vmatpush1.msra.mxu0 0.0
    %70 = vmatprep.subr.mxu0 0.0
    %71 = vmatpush1.msra.mxu0 0.0
    %72 = vmatprep.subr.mxu0 0.0
    %73 = vmatpush1.msra.mxu0 0.0
    %74 = vmatprep.subr.mxu0 0.0
    %75 = vmatpush1.msra.mxu0 0.0
    %76 = vmatprep.subr.mxu0 0.0
    %77 = vmatpush1.msra.mxu0 0.0
    %78 = vmatprep.subr.mxu0 0.0
    %79 = vmatpush1.msra.mxu0 0.0
    %80 = vmatprep.subr.mxu0 0.0
    %81 = vmatpush1.msra.mxu0 0.0
    %82 = vmatprep.subr.mxu0 0.0
    %83 = vmatpush1.msra.mxu0 0.0
    %84 = vmatprep.subr.mxu0 0.0
    %85 = vmatpush1.msra.mxu0 0.0
    %86 = vmatprep.subr.mxu0 0.0
    %87 = vmatpush1.msra.mxu0 0.0
    %88 = vmatprep.subr.mxu0 0.0
    %89 = vmatpush1.msra.mxu0 0.0
    %90 = vmatprep.subr.mxu0 0.0
    %91 = vmatpush1.msra.mxu0 0.0
    %92 = vmatprep.subr.mxu0 0.0
    %93 = vmatpush1.msra.mxu0 0.0
    %94 = vmatprep.mubr.f32.mxu0 0.0
    %95 = vmatmul.mubr.f32.gmra.mrb[0].mxu0 %v28
    %v96 = vpop.f32.mrb[0].mxu0
    %v97 = vadd.f32 0.0, %v96
    %v98 = vpop.f32.mrb[0].mxu0
    %99 = vdwg.mxu0
    %vm100 = vcmask 130048
    %v102 = vsel %vm100, %v21, 0
    %104 = vmatprep.subr.mxu0 0.0
    %105 = vmatpush1.msra.mxu0 %v22
    %106 = vmatprep.subr.mxu0 0.0
    %107 = vmatpush1.msra.mxu0 %v23
    %108 = vmatprep.subr.mxu0 0.0
    %109 = vmatpush1.msra.mxu0 0.0
    %110 = vmatprep.subr.mxu0 0.0
    %111 = vmatpush1.msra.mxu0 0.0
    %112 = vmatprep.subr.mxu0 0.0
    %113 = vmatpush1.msra.mxu0 0.0
    %114 = vmatprep.subr.mxu0 0.0
    %115 = vmatpush1.msra.mxu0 0.0
    %116 = vmatprep.subr.mxu0 0.0
    %117 = vmatpush1.msra.mxu0 0.0
    %118 = vmatprep.subr.mxu0 0.0
    %119 = vmatpush1.msra.mxu0 0.0
    %120 = vmatprep.subr.mxu0 0.0
    %121 = vmatpush1.msra.mxu0 0.0
    %122 = vmatprep.subr.mxu0 0.0
    %123 = vmatpush1.msra.mxu0 0.0
    %124 = vmatprep.subr.mxu0 0.0
    %125 = vmatpush1.msra.mxu0 0.0
    %126 = vmatprep.subr.mxu0 0.0
    %127 = vmatpush1.msra.mxu0 0.0
    %128 = vmatprep.subr.mxu0 0.0
    %129 = vmatpush1.msra.mxu0 0.0
    %130 = vmatprep.subr.mxu0 0.0
    %131 = vmatpush1.msra.mxu0 0.0
    %132 = vmatprep.subr.mxu0 0.0
    %133 = vmatpush1.msra.mxu0 0.0
    %134 = vmatprep.subr.mxu0 0.0
    %135 = vmatpush1.msra.mxu0 0.0
    %136 = vmatprep.subr.mxu0 0.0
    %137 = vmatpush1.msra.mxu0 0.0
    %138 = vmatprep.subr.mxu0 0.0
    %139 = vmatpush1.msra.mxu0 0.0
    %140 = vmatprep.subr.mxu0 0.0
    %141 = vmatpush1.msra.mxu0 0.0
    %142 = vmatprep.subr.mxu0 0.0
    %143 = vmatpush1.msra.mxu0 0.0
    %144 = vmatprep.subr.mxu0 0.0
    %145 = vmatpush1.msra.mxu0 0.0
    %146 = vmatprep.subr.mxu0 0.0
    %147 = vmatpush1.msra.mxu0 0.0
    %148 = vmatprep.subr.mxu0 0.0
    %149 = vmatpush1.msra.mxu0 0.0
    %150 = vmatprep.subr.mxu0 0.0
    %151 = vmatpush1.msra.mxu0 0.0
    %152 = vmatprep.subr.mxu0 0.0
    %153 = vmatpush1.msra.mxu0 0.0
    %154 = vmatprep.subr.mxu0 0.0
    %155 = vmatpush1.msra.mxu0 0.0
    %156 = vmatprep.subr.mxu0 0.0
    %157 = vmatpush1.msra.mxu0 0.0
    %158 = vmatprep.subr.mxu0 0.0
    %159 = vmatpush1.msra.mxu0 0.0
    %160 = vmatprep.subr.mxu0 0.0
    %161 = vmatpush1.msra.mxu0 0.0
    %162 = vmatprep.subr.mxu0 0.0
    %163 = vmatpush1.msra.mxu0 0.0
    %164 = vmatprep.subr.mxu0 0.0
    %165 = vmatpush1.msra.mxu0 0.0
    %166 = vmatprep.subr.mxu0 0.0
    %167 = vmatpush1.msra.mxu0 0.0
    %168 = vmatprep.mubr.f32.mxu0 0.0
    %169 = vmatmul.mubr.f32.gmra.mrb[0].mxu0 %v102
    %v170 = vpop.f32.mrb[0].mxu0
    %v171 = vadd.f32 %v97, %v170
    %v172 = vpop.f32.mrb[0].mxu0
    %173 = vdwg.mxu0
    %v174 = vld [vmem:[%s2 + $0x18] sm:$0x1]
    %v175 = vlaneseq
    %v176 = vshrl.u32 %v175, 7
    %v177 = vsub.s32 0, %v176
    %v178 = vrot.slane %v174, %v177
    %v179 = vadd.f32 %v171, %v178
    %v180 = vmax.f32 %v179, 0.0
    %v181 = vld [vmem:[%s3] sm:$0xff]
    %v182 = vld [vmem:[%s3 + $0x8] sm:$0xff]
    %v183 = vld [vmem:[%s3 + $0x10] sm:$0xff]
    %v184 = vld [vmem:[%s3 + $0x18] sm:$0xff]
    %v185 = vld [vmem:[%s3 + $0x20] sm:$0xff]
    %v186 = vld [vmem:[%s3 + $0x28] sm:$0xff]
    %v187 = vld [vmem:[%s3 + $0x30] sm:$0xff]
    %v188 = vld [vmem:[%s3 + $0x38] sm:$0xff]
    %v189 = vld [vmem:[%s3 + $0x40] sm:$0x1]
    %v190 = vlaneseq
    %v191 = vshrl.u32 %v190, 7
    %v192 = vsub.s32 0, %v191
    %v193 = vrot.slane %v189, %v192
    %vm194 = vcmask 523264
    %v196 = vsel %vm194, %v180, 0
    %198 = vmatprep.subr.mxu0 0.0
    %199 = vmatpush1.msra.mxu0 %v181
    %200 = vmatprep.subr.mxu0 0.0
    %201 = vmatpush1.msra.mxu0 %v182
    %202 = vmatprep.subr.mxu0 0.0
    %203 = vmatpush1.msra.mxu0 %v183
    %204 = vmatprep.subr.mxu0 0.0
    %205 = vmatpush1.msra.mxu0 %v184
    %206 = vmatprep.subr.mxu0 0.0
    %207 = vmatpush1.msra.mxu0 %v185
    %208 = vmatprep.subr.mxu0 0.0
    %209 = vmatpush1.msra.mxu0 %v186
    %210 = vmatprep.subr.mxu0 0.0
    %211 = vmatpush1.msra.mxu0 %v187
    %212 = vmatprep.subr.mxu0 0.0
    %213 = vmatpush1.msra.mxu0 %v188
    %214 = vmatprep.subr.mxu0 0.0
    %215 = vmatpush1.msra.mxu0 0.0
    %216 = vmatprep.subr.mxu0 0.0
    %217 = vmatpush1.msra.mxu0 0.0
    %218 = vmatprep.subr.mxu0 0.0
    %219 = vmatpush1.msra.mxu0 0.0
    %220 = vmatprep.subr.mxu0 0.0
    %221 = vmatpush1.msra.mxu0 0.0
    %222 = vmatprep.subr.mxu0 0.0
    %223 = vmatpush1.msra.mxu0 0.0
    %224 = vmatprep.subr.mxu0 0.0
    %225 = vmatpush1.msra.mxu0 0.0
    %226 = vmatprep.subr.mxu0 0.0
    %227 = vmatpush1.msra.mxu0 0.0
    %228 = vmatprep.subr.mxu0 0.0
    %229 = vmatpush1.msra.mxu0 0.0
    %230 = vmatprep.subr.mxu0 0.0
    %231 = vmatpush1.msra.mxu0 0.0
    %232 = vmatprep.subr.mxu0 0.0
    %233 = vmatpush1.msra.mxu0 0.0
    %234 = vmatprep.subr.mxu0 0.0
    %235 = vmatpush1.msra.mxu0 0.0
    %236 = vmatprep.subr.mxu0 0.0
    %237 = vmatpush1.msra.mxu0 0.0
    %238 = vmatprep.subr.mxu0 0.0
    %239 = vmatpush1.msra.mxu0 0.0
    %240 = vmatprep.subr.mxu0 0.0
    %241 = vmatpush1.msra.mxu0 0.0
    %242 = vmatprep.subr.mxu0 0.0
    %243 = vmatpush1.msra.mxu0 0.0
    %244 = vmatprep.subr.mxu0 0.0
    %245 = vmatpush1.msra.mxu0 0.0
    %246 = vmatprep.subr.mxu0 0.0
    %247 = vmatpush1.msra.mxu0 0.0
    %248 = vmatprep.subr.mxu0 0.0
    %249 = vmatpush1.msra.mxu0 0.0
    %250 = vmatprep.subr.mxu0 0.0
    %251 = vmatpush1.msra.mxu0 0.0
    %252 = vmatprep.subr.mxu0 0.0
    %253 = vmatpush1.msra.mxu0 0.0
    %254 = vmatprep.subr.mxu0 0.0
    %255 = vmatpush1.msra.mxu0 0.0
    %256 = vmatprep.subr.mxu0 0.0
    %257 = vmatpush1.msra.mxu0 0.0
    %258 = vmatprep.subr.mxu0 0.0
    %259 = vmatpush1.msra.mxu0 0.0
    %260 = vmatprep.subr.mxu0 0.0
    %261 = vmatpush1.msra.mxu0 0.0
    %262 = vmatprep.mubr.f32.mxu0 0.0
    %263 = vmatmul.mubr.f32.gmra.mrb[0].mxu0 %v196
    %v264 = vpop.f32.mrb[0].mxu0
    %v265 = vadd.f32 %v193, %v264
    %v266 = vpop.f32.mrb[0].mxu0
    %267 = vdwg.mxu0
    %v268 = vmax.f32 %v265, 0.0
    %v269 = vld [vmem:[%s4] sm:$0xff]
    %v270 = vld [vmem:[%s4 + $0x8] sm:$0xff]
    %v271 = vld [vmem:[%s4 + $0x10] sm:$0xff]
    %v272 = vld [vmem:[%s4 + $0x18] sm:$0xff]
    %v273 = vld [vmem:[%s4 + $0x20] sm:$0xff]
    %v274 = vld [vmem:[%s4 + $0x28] sm:$0xff]
    %v275 = vld [vmem:[%s4 + $0x30] sm:$0xff]
    %v276 = vld [vmem:[%s4 + $0x38] sm:$0xff]
    %v277 = vld [vmem:[%s4 + $0x40] sm:$0x1]
    %v278 = vlaneseq
    %v279 = vshrl.u32 %v278, 7
    %v280 = vsub.s32 0, %v279
    %v281 = vrot.slane %v277, %v280
    %v283 = vsel %vm194, %v268, 0
    %285 = vmatprep.subr.mxu0 0.0
    %286 = vmatpush1.msra.mxu0 %v269
    %287 = vmatprep.subr.mxu0 0.0
    %288 = vmatpush1.msra.mxu0 %v270
    %289 = vmatprep.subr.mxu0 0.0
    %290 = vmatpush1.msra.mxu0 %v271
    %291 = vmatprep.subr.mxu0 0.0
    %292 = vmatpush1.msra.mxu0 %v272
    %293 = vmatprep.subr.mxu0 0.0
    %294 = vmatpush1.msra.mxu0 %v273
    %295 = vmatprep.subr.mxu0 0.0
    %296 = vmatpush1.msra.mxu0 %v274
    %297 = vmatprep.subr.mxu0 0.0
    %298 = vmatpush1.msra.mxu0 %v275
    %299 = vmatprep.subr.mxu0 0.0
    %300 = vmatpush1.msra.mxu0 %v276
    %301 = vmatprep.subr.mxu0 0.0
    %302 = vmatpush1.msra.mxu0 0.0
    %303 = vmatprep.subr.mxu0 0.0
    %304 = vmatpush1.msra.mxu0 0.0
    %305 = vmatprep.subr.mxu0 0.0
    %306 = vmatpush1.msra.mxu0 0.0
    %307 = vmatprep.subr.mxu0 0.0
    %308 = vmatpush1.msra.mxu0 0.0
    %309 = vmatprep.subr.mxu0 0.0
    %310 = vmatpush1.msra.mxu0 0.0
    %311 = vmatprep.subr.mxu0 0.0
    %312 = vmatpush1.msra.mxu0 0.0
    %313 = vmatprep.subr.mxu0 0.0
    %314 = vmatpush1.msra.mxu0 0.0
    %315 = vmatprep.subr.mxu0 0.0
    %316 = vmatpush1.msra.mxu0 0.0
    %317 = vmatprep.subr.mxu0 0.0
    %318 = vmatpush1.msra.mxu0 0.0
    %319 = vmatprep.subr.mxu0 0.0
    %320 = vmatpush1.msra.mxu0 0.0
    %321 = vmatprep.subr.mxu0 0.0
    %322 = vmatpush1.msra.mxu0 0.0
    %323 = vmatprep.subr.mxu0 0.0
    %324 = vmatpush1.msra.mxu0 0.0
    %325 = vmatprep.subr.mxu0 0.0
    %326 = vmatpush1.msra.mxu0 0.0
    %327 = vmatprep.subr.mxu0 0.0
    %328 = vmatpush1.msra.mxu0 0.0
    %329 = vmatprep.subr.mxu0 0.0
    %330 = vmatpush1.msra.mxu0 0.0
    %331 = vmatprep.subr.mxu0 0.0
    %332 = vmatpush1.msra.mxu0 0.0
    %333 = vmatprep.subr.mxu0 0.0
    %334 = vmatpush1.msra.mxu0 0.0
    %335 = vmatprep.subr.mxu0 0.0
    %336 = vmatpush1.msra.mxu0 0.0
    %337 = vmatprep.subr.mxu0 0.0
    %338 = vmatpush1.msra.mxu0 0.0
    %339 = vmatprep.subr.mxu0 0.0
    %340 = vmatpush1.msra.mxu0 0.0
    %341 = vmatprep.subr.mxu0 0.0
    %342 = vmatpush1.msra.mxu0 0.0
    %343 = vmatprep.subr.mxu0 0.0
    %344 = vmatpush1.msra.mxu0 0.0
    %345 = vmatprep.subr.mxu0 0.0
    %346 = vmatpush1.msra.mxu0 0.0
    %347 = vmatprep.subr.mxu0 0.0
    %348 = vmatpush1.msra.mxu0 0.0
    %349 = vmatprep.mubr.f32.mxu0 0.0
    %350 = vmatmul.mubr.f32.gmra.mrb[0].mxu0 %v283
    %v351 = vpop.f32.mrb[0].mxu0
    %v352 = vadd.f32 %v281, %v351
    %v353 = vpop.f32.mrb[0].mxu0
    %354 = vdwg.mxu0
    %355 = vst [vmem:[#allocation2] sm:$0xff] %v352
    // Predicated region
    $region22: #{tpu_custom_call.1} parent=1 // pred_check
      _
    $region23: #{tpu_custom_call.1} parent=1 // pred_check_branch
      %357 = sbr.rel (0) target = $region25
    $region24: #{tpu_custom_call.1} parent=1 // pred_region
      %s359 = ssub.s32 128, 128
      %360 = vsyncadd [#allocation3], %s359
      %s362 = sshll.u32 [#allocation2], 4
      %s363 = int_to_ptr.vmem [resolvable:$true] %s362
      %365 = dma.vmem_to_hbm [thread:$0]  %s363, 128, %s5, [#allocation3]
    $region25: #{tpu_custom_call.1} parent=1 // pred_fallthru
      _
    // Predicated region
    $region26: #{tpu_custom_call.1} parent=1 // pred_check
      _
    $region27: #{tpu_custom_call.1} parent=1 // pred_check_branch
      %367 = sbr.rel (0) target = $region29
    $region28: #{tpu_custom_call.1} parent=1 // pred_region
      %368 = dma.done [#allocation3], 128
    $region29: #{tpu_custom_call.1} parent=1 // pred_fallthru
      _
    %369 = vsyncpa [#allocation3], 1

</llo_original>
